<compile_context>
chip_gen: v6e
topology: v6e:2x2x1
jax: 0.10.0
libtpu: 0.0.40
codegen_flags: <defaults>
</compile_context>

<pallas_src>
import functools

import jax
import jax.numpy as jnp
import numpy as np
from jax import lax
from jax.experimental import pallas as pl
from jax.experimental.pallas import tpu as pltpu


# ----------------------------------------------------------------------------
# constants from Compare2Scorer.__init__
# ----------------------------------------------------------------------------
ANCHOR_MATRIX = np.array(
    [[0.5, 0.25912809, 0.00033130276, 1.6087297e-06, 1.1803027e-09],
     [0.74087191, 0.5, 0.24985345, 0.099954158, 1.8675303e-08],
     [0.99966872, 0.75014657, 0.5, 0.4996888, 0.24852838],
     [0.99999839, 0.90004587, 0.5003112, 0.5, 0.25400183],
     [1.0, 1.0, 0.75147164, 0.74599814, 0.5]],
    dtype=np.float32)

WEIGHT_TENSOR = np.array([0.0, 0.25, 0.5, 0.75, 1.0], dtype=np.float32)
# (in-kernel the weights are rebuilt as 0.25 * lane_index, which equals this)

NUM_ANCHORS = 5            # anchor_intervals * num_anchor_image_per_interval
NUM_PREF = 5               # ['inferior','worse','similar','better','superior']
N_SCORES = NUM_ANCHORS + 1 # size of the updated comparison matrix (6)
SUB, LANE = 8, 128         # one f32 vreg tile


def _pad_anchor(m):
    """Pad the 5x5 anchor matrix (plus the 0.5 diagonal of the new entry)
    into an (8,128) tile; everything else is exactly zero."""
    out = np.zeros((SUB, LANE), np.float32)
    out[:NUM_ANCHORS, :NUM_ANCHORS] = m
    out[NUM_ANCHORS, NUM_ANCHORS] = 0.5
    return out


ANCHOR_BASE = jnp.asarray(_pad_anchor(ANCHOR_MATRIX))
ANCHOR_BASE_T = jnp.asarray(_pad_anchor(ANCHOR_MATRIX.T))


def _adam_tables(num_iterations, lr=0.1, b1=0.9, b2=0.999, eps=1e-8):
    """Fold PyTorch-Adam bias correction into per-step scalars.
    update = lr_t * m / (sqrt(v) + eps_t) is exactly PyTorch's
    (lr/bc1) * m / (sqrt(v)/sqrt(bc2) + eps)."""
    t = np.arange(1, num_iterations + 1, dtype=np.float64)
    bc1 = 1.0 - b1 ** t
    bc2 = 1.0 - b2 ** t
    lr_t = lr * np.sqrt(bc2) / bc1
    eps_t = eps * np.sqrt(bc2)
    return (jnp.asarray(lr_t, jnp.float32), jnp.asarray(eps_t, jnp.float32))


# ----------------------------------------------------------------------------
# fused kernel: probabilities -> updated matrix -> Adam loop -> 0..100 rescale
# ----------------------------------------------------------------------------
def fused_kernel(logits_ref, anchor_ref, anchor_t_ref, s0_ref,
                 lr_ref, epsc_ref, out_ref, *, num_iterations):
    f32 = jnp.float32
    row_i = lax.broadcasted_iota(jnp.int32, (SUB, LANE), 0)
    col_i = lax.broadcasted_iota(jnp.int32, (SUB, LANE), 1)
    eye = (row_i == col_i).astype(f32)                          # diag mask
    mask_col = lax.broadcasted_iota(jnp.int32, (SUB, 1), 0) < N_SCORES
    mask_col_f = mask_col.astype(f32)

    # --- 1) probability per anchor: softmax(logits/100) . weights -----------
    l = logits_ref[...] * f32(0.01)                             # (8,128)
    e = jnp.exp(l - jnp.max(l, axis=-1, keepdims=True))
    p = e / jnp.sum(e, axis=-1, keepdims=True)
    w_row = jnp.where(col_i < NUM_PREF, col_i.astype(f32) * f32(0.25), f32(0.0))
    probs_col = jnp.sum(p * w_row, axis=-1, keepdims=True)      # (8,1), anchor on sublane
    # lane-major view of the probabilities (diag mask + sublane reduce; no
    # matrix transpose needed)
    probs_row = jnp.sum(jnp.broadcast_to(probs_col, (SUB, LANE)) * eye,
                        axis=0, keepdims=True)                  # (1,128)

    # --- 2) update_matrix: new row = probs, new col = 1-probs, diag 0.5 -----
    row_new = (row_i == NUM_ANCHORS) & (col_i < NUM_ANCHORS)
    col_new = (col_i == NUM_ANCHORS) & (row_i < NUM_ANCHORS)
    pr_b = jnp.broadcast_to(probs_row, (SUB, LANE))
    pc_b = jnp.broadcast_to(probs_col, (SUB, LANE))
    c = (anchor_ref[...]
         + jnp.where(row_new, pr_b, f32(0.0))
         + jnp.where(col_new, f32(1.0) - pc_b, f32(0.0)))       # (8,128)
    ct = (anchor_t_ref[...]
          + jnp.where(col_new, pc_b, f32(0.0))
          + jnp.where(row_new, f32(1.0) - pr_b, f32(0.0)))      # exact c^T

    # --- 3) Adam loop ---------------------------------------------------------
    #   loss = -( sum c_ij*log(max(sigmoid(s_i - s_j), 1e-6)) - sum(s^2)/2 )
    #   grad_k = s_k - (rowsum(G)_k - colsum(G)_k),
    #   G_ij  = c_ij  * (1 - sig_ij) * [sig_ij   > 1e-6]
    #   G^T_ij= c^T_ij*      sig_ij  * [1-sig_ij > 1e-6]   (no transpose in loop)
    eps_sig = f32(1e-6)
    b1, b2 = f32(0.9), f32(0.999)

    def step(t, carry):
        s, m, v = carry                                         # (8,1) each
        s_b = jnp.broadcast_to(s, (SUB, LANE))                  # [i,j] = s_i
        s_row = jnp.sum(s_b * eye, axis=0, keepdims=True)       # (1,128) = s_j
        diff = s_b - jnp.broadcast_to(s_row, (SUB, LANE))       # s_i - s_j
        e_neg = jnp.exp(-diff)
        r = pl.reciprocal(f32(1.0) + e_neg, approx=True)        # EUP slot
        sig = r                                                 # sigmoid(diff)
        oms = e_neg * r                                         # 1 - sigmoid(diff)
        g = jnp.where(sig > eps_sig, c * oms, f32(0.0))
        gt = jnp.where(oms > eps_sig, ct * sig, f32(0.0))
        net = jnp.sum(g - gt, axis=-1, keepdims=True)           # rowsum - colsum, (8,1)
        grad = (s - net) * mask_col_f                           # padded lanes pinned to 0

        m = b1 * m + (f32(1.0) - b1) * grad
        v = b2 * v + (f32(1.0) - b2) * (grad * grad)
        s = s - lr_ref[t] * m / (jnp.sqrt(v) + epsc_ref[t])     # bias-corr folded
        return s, m, v

    s0 = s0_ref[...]
    zeros = jnp.zeros_like(s0)
    s, _, _ = lax.fori_loop(0, num_iterations, step, (s0, zeros, zeros))

    # --- final 0..100 rescale -------------------------------------------------
    big = f32(1e30)
    s_min = jnp.min(jnp.where(mask_col, s, big), axis=0, keepdims=True)
    s_max = jnp.max(jnp.where(mask_col, s, -big), axis=0, keepdims=True)
    # clamp to keep the degenerate all-equal case finite (reference would NaN)
    denom = jnp.maximum(s_max - s_min, f32(1e-12))
    scaled = f32(100.0) * (s - s_min) / denom                   # (8,1)
    out_ref[...] = jnp.broadcast_to(scaled, (SUB, LANE))        # lane-dense store


# ----------------------------------------------------------------------------
# wrapper: logits -> scaled score of the appended (test-image) entry
# ----------------------------------------------------------------------------
@functools.partial(jax.jit, static_argnames=("num_iterations",))
def compare2score_forward(logits, key, num_iterations=100):
    """logits: (NUM_ANCHORS, NUM_PREF) f32 preferential-token logits."""
    logits_pad = jnp.full((SUB, LANE), -1e9, jnp.float32)
    logits_pad = logits_pad.at[:NUM_ANCHORS, :NUM_PREF].set(logits)

    # torch.manual_seed(0)/torch.rand replaced by jax.random.uniform — same
    # distribution, different RNG stream (not bit-comparable to PyTorch).
    s0 = jax.random.uniform(key, (N_SCORES,), jnp.float32)
    s0_col = jnp.zeros((SUB, 1), jnp.float32).at[:N_SCORES, 0].set(s0)

    lr_table, eps_table = _adam_tables(num_iterations)

    vmem = pl.BlockSpec(memory_space=pltpu.MemorySpace.VMEM)
    smem = pl.BlockSpec(memory_space=pltpu.MemorySpace.SMEM)

    out = pl.pallas_call(
        functools.partial(fused_kernel, num_iterations=num_iterations),
        out_shape=jax.ShapeDtypeStruct((SUB, LANE), jnp.float32),
        in_specs=[vmem, vmem, vmem, vmem, smem, smem],
        out_specs=vmem,
    )(logits_pad, ANCHOR_BASE, ANCHOR_BASE_T, s0_col, lr_table, eps_table)

    # scaled_scores[-1] in the reference == entry n-1 == index NUM_ANCHORS
    return out[NUM_ANCHORS, 0]


if __name__ == "__main__":
    key = jax.random.PRNGKey(0)
    k_logits, k_scores = jax.random.split(key)
    # TODO(synk): the mPLUG-Owl2 VLM forward that produces these logits (and
    # the tokenizer / PIL image preprocessing / anchor-image dataset) has no
    # Pallas equivalent; synthetic per-anchor preferential-token logits stand
    # in for model(...)['logits'][:, -1, preferential_ids_].
    logits = 2.0 * jax.random.normal(k_logits, (NUM_ANCHORS, NUM_PREF),
                                     dtype=jnp.float32)
    score = compare2score_forward(logits, k_scores)
    score = jax.block_until_ready(score)
    assert jnp.isfinite(score)
    print("KERNEL_OK")
</pallas_src>

<mosaic_0001>
module attributes {stable_mosaic.version = 11 : i64} {
  func.func @fused_kernel(%arg0: memref<8x128xf32, #tpu.memory_space<vmem>>, %arg1: memref<8x128xf32, #tpu.memory_space<vmem>>, %arg2: memref<8x128xf32, #tpu.memory_space<vmem>>, %arg3: memref<8x1xf32, #tpu.memory_space<vmem>>, %arg4: memref<100xf32, #tpu.memory_space<smem>>, %arg5: memref<100xf32, #tpu.memory_space<smem>>, %arg6: memref<8x128xf32, #tpu.memory_space<vmem>>) attributes {dimension_semantics = [], scalar_prefetch = 0 : i64, scratch_operands = 0 : i64, tpu.core_type = #tpu.core_type<tc>} {
    %0 = tpu.iota {dimensions = array<i32: 0>} : vector<8x128xi32>
    %1 = tpu.iota {dimensions = array<i32: 1>} : vector<8x128xi32>
    %2 = arith.cmpi eq, %0, %1 : vector<8x128xi32>
    %3 = arith.extui %2 : vector<8x128xi1> to vector<8x128xi32>
    %4 = arith.sitofp %3 : vector<8x128xi32> to vector<8x128xf32>
    %5 = tpu.iota {dimensions = array<i32: 0>} : vector<8x1xi32>
    %c6_i32 = arith.constant 6 : i32
    %6 = vector.broadcast %c6_i32 : i32 to vector<8x1xi32>
    %7 = arith.cmpi slt, %5, %6 : vector<8x1xi32>
    %8 = arith.extui %7 : vector<8x1xi1> to vector<8x1xi32>
    %9 = arith.sitofp %8 : vector<8x1xi32> to vector<8x1xf32>
    %c0 = arith.constant 0 : index
    %c0_0 = arith.constant 0 : index
    %10 = vector.load %arg0[%c0, %c0_0] : memref<8x128xf32, #tpu.memory_space<vmem>>, vector<8x128xf32>
    %cst = arith.constant 0.00999999977 : f32
    %11 = vector.broadcast %cst : f32 to vector<8x128xf32>
    %12 = arith.mulf %10, %11 : vector<8x128xf32>
    %cst_1 = arith.constant dense<0xFF800000> : vector<8xf32>
    %13 = vector.multi_reduction <maximumf>, %12, %cst_1 [1] : vector<8x128xf32> to vector<8xf32>
    %14 = vector.shape_cast %13 : vector<8xf32> to vector<8x1xf32>
    %15 = vector.broadcast %14 : vector<8x1xf32> to vector<8x128xf32>
    %16 = arith.subf %12, %15 : vector<8x128xf32>
    %17 = math.exp %16 : vector<8x128xf32>
    %cst_2 = arith.constant dense<0.000000e+00> : vector<8xf32>
    %18 = vector.multi_reduction <add>, %17, %cst_2 [1] : vector<8x128xf32> to vector<8xf32>
    %19 = vector.shape_cast %18 : vector<8xf32> to vector<8x1xf32>
    %20 = vector.broadcast %19 : vector<8x1xf32> to vector<8x128xf32>
    %21 = arith.divf %17, %20 : vector<8x128xf32>
    %c5_i32 = arith.constant 5 : i32
    %22 = vector.broadcast %c5_i32 : i32 to vector<8x128xi32>
    %23 = arith.cmpi slt, %1, %22 : vector<8x128xi32>
    %24 = arith.sitofp %1 : vector<8x128xi32> to vector<8x128xf32>
    %cst_3 = arith.constant 2.500000e-01 : f32
    %25 = vector.broadcast %cst_3 : f32 to vector<8x128xf32>
    %26 = arith.mulf %24, %25 : vector<8x128xf32>
    %cst_4 = arith.constant 0.000000e+00 : f32
    %27 = vector.broadcast %cst_4 : f32 to vector<8x128xf32>
    %28 = arith.select %23, %26, %27 : vector<8x128xi1>, vector<8x128xf32>
    %29 = arith.mulf %21, %28 : vector<8x128xf32>
    %cst_5 = arith.constant dense<0.000000e+00> : vector<8xf32>
    %30 = vector.multi_reduction <add>, %29, %cst_5 [1] : vector<8x128xf32> to vector<8xf32>
    %31 = vector.shape_cast %30 : vector<8xf32> to vector<8x1xf32>
    %32 = vector.shape_cast %31 : vector<8x1xf32> to vector<8x1xf32>
    %33 = vector.broadcast %32 : vector<8x1xf32> to vector<8x128xf32>
    %34 = arith.mulf %33, %4 : vector<8x128xf32>
    %cst_6 = arith.constant dense<0.000000e+00> : vector<128xf32>
    %35 = vector.multi_reduction <add>, %34, %cst_6 [0] : vector<8x128xf32> to vector<128xf32>
    %36 = vector.shape_cast %35 : vector<128xf32> to vector<1x128xf32>
    %c5_i32_7 = arith.constant 5 : i32
    %37 = vector.broadcast %c5_i32_7 : i32 to vector<8x128xi32>
    %38 = arith.cmpi eq, %0, %37 : vector<8x128xi32>
    %c5_i32_8 = arith.constant 5 : i32
    %39 = vector.broadcast %c5_i32_8 : i32 to vector<8x128xi32>
    %40 = arith.cmpi slt, %1, %39 : vector<8x128xi32>
    %41 = arith.andi %38, %40 : vector<8x128xi1>
    %c5_i32_9 = arith.constant 5 : i32
    %42 = vector.broadcast %c5_i32_9 : i32 to vector<8x128xi32>
    %43 = arith.cmpi eq, %1, %42 : vector<8x128xi32>
    %c5_i32_10 = arith.constant 5 : i32
    %44 = vector.broadcast %c5_i32_10 : i32 to vector<8x128xi32>
    %45 = arith.cmpi slt, %0, %44 : vector<8x128xi32>
    %46 = arith.andi %43, %45 : vector<8x128xi1>
    %47 = vector.shape_cast %36 : vector<1x128xf32> to vector<1x128xf32>
    %48 = vector.broadcast %47 : vector<1x128xf32> to vector<8x128xf32>
    %49 = vector.shape_cast %31 : vector<8x1xf32> to vector<8x1xf32>
    %50 = vector.broadcast %49 : vector<8x1xf32> to vector<8x128xf32>
    %c0_11 = arith.constant 0 : index
    %c0_12 = arith.constant 0 : index
    %51 = vector.load %arg1[%c0_11, %c0_12] : memref<8x128xf32, #tpu.memory_space<vmem>>, vector<8x128xf32>
    %cst_13 = arith.constant 0.000000e+00 : f32
    %52 = vector.broadcast %cst_13 : f32 to vector<8x128xf32>
    %53 = arith.select %41, %48, %52 : vector<8x128xi1>, vector<8x128xf32>
    %54 = arith.addf %51, %53 : vector<8x128xf32>
    %cst_14 = arith.constant 1.000000e+00 : f32
    %55 = vector.broadcast %cst_14 : f32 to vector<8x128xf32>
    %56 = arith.subf %55, %50 : vector<8x128xf32>
    %cst_15 = arith.constant 0.000000e+00 : f32
    %57 = vector.broadcast %cst_15 : f32 to vector<8x128xf32>
    %58 = arith.select %46, %56, %57 : vector<8x128xi1>, vector<8x128xf32>
    %59 = arith.addf %54, %58 : vector<8x128xf32>
    %c0_16 = arith.constant 0 : index
    %c0_17 = arith.constant 0 : index
    %60 = vector.load %arg2[%c0_16, %c0_17] : memref<8x128xf32, #tpu.memory_space<vmem>>, vector<8x128xf32>
    %cst_18 = arith.constant 0.000000e+00 : f32
    %61 = vector.broadcast %cst_18 : f32 to vector<8x128xf32>
    %62 = arith.select %46, %50, %61 : vector<8x128xi1>, vector<8x128xf32>
    %63 = arith.addf %60, %62 : vector<8x128xf32>
    %cst_19 = arith.constant 1.000000e+00 : f32
    %64 = vector.broadcast %cst_19 : f32 to vector<8x128xf32>
    %65 = arith.subf %64, %48 : vector<8x128xf32>
    %cst_20 = arith.constant 0.000000e+00 : f32
    %66 = vector.broadcast %cst_20 : f32 to vector<8x128xf32>
    %67 = arith.select %41, %65, %66 : vector<8x128xi1>, vector<8x128xf32>
    %68 = arith.addf %63, %67 : vector<8x128xf32>
    %c0_21 = arith.constant 0 : index
    %c0_22 = arith.constant 0 : index
    %69 = vector.load %arg3[%c0_21, %c0_22] : memref<8x1xf32, #tpu.memory_space<vmem>>, vector<8x1xf32>
    %cst_23 = arith.constant 0.000000e+00 : f32
    %70 = vector.broadcast %cst_23 : f32 to vector<8x1xf32>
    %cst_24 = arith.constant 9.99999997E-7 : f32
    %cst_25 = arith.constant 0.899999976 : f32
    %cst_26 = arith.constant 9.990000e-01 : f32
    %c0_i32 = arith.constant 0 : i32
    %c100_i32 = arith.constant 100 : i32
    %71 = arith.addi %c0_i32, %c100_i32 : i32
    %c1_i32 = arith.constant 1 : i32
    %72:3 = scf.for %arg7 = %c0_i32 to %71 step %c1_i32 iter_args(%arg8 = %69, %arg9 = %70, %arg10 = %70) -> (vector<8x1xf32>, vector<8x1xf32>, vector<8x1xf32>)  : i32 {
      %94 = vector.shape_cast %arg8 : vector<8x1xf32> to vector<8x1xf32>
      %95 = vector.broadcast %94 : vector<8x1xf32> to vector<8x128xf32>
      %96 = arith.mulf %95, %4 : vector<8x128xf32>
      %cst_37 = arith.constant dense<0.000000e+00> : vector<128xf32>
      %97 = vector.multi_reduction <add>, %96, %cst_37 [0] : vector<8x128xf32> to vector<128xf32>
      %98 = vector.shape_cast %97 : vector<128xf32> to vector<1x128xf32>
      %99 = vector.shape_cast %98 : vector<1x128xf32> to vector<1x128xf32>
      %100 = vector.broadcast %99 : vector<1x128xf32> to vector<8x128xf32>
      %101 = arith.subf %95, %100 : vector<8x128xf32>
      %cst_38 = arith.constant 0.000000e+00 : f32
      %102 = vector.broadcast %cst_38 : f32 to vector<8x128xf32>
      %103 = arith.subf %102, %101 : vector<8x128xf32>
      %104 = math.exp %103 : vector<8x128xf32>
      %cst_39 = arith.constant 1.000000e+00 : f32
      %105 = vector.broadcast %cst_39 : f32 to vector<8x128xf32>
      %106 = arith.addf %105, %104 : vector<8x128xf32>
      %107 = tpu.reciprocal %106 {approx = true} : vector<8x128xf32> -> vector<8x128xf32>
      %108 = arith.mulf %104, %107 : vector<8x128xf32>
      %109 = vector.broadcast %cst_24 : f32 to vector<8x128xf32>
      %110 = arith.cmpf ogt, %107, %109 : vector<8x128xf32>
      %111 = arith.mulf %59, %108 : vector<8x128xf32>
      %cst_40 = arith.constant 0.000000e+00 : f32
      %112 = vector.broadcast %cst_40 : f32 to vector<8x128xf32>
      %113 = arith.select %110, %111, %112 : vector<8x128xi1>, vector<8x128xf32>
      %114 = vector.broadcast %cst_24 : f32 to vector<8x128xf32>
      %115 = arith.cmpf ogt, %108, %114 : vector<8x128xf32>
      %116 = arith.mulf %68, %107 : vector<8x128xf32>
      %cst_41 = arith.constant 0.000000e+00 : f32
      %117 = vector.broadcast %cst_41 : f32 to vector<8x128xf32>
      %118 = arith.select %115, %116, %117 : vector<8x128xi1>, vector<8x128xf32>
      %119 = arith.subf %113, %118 : vector<8x128xf32>
      %cst_42 = arith.constant dense<0.000000e+00> : vector<8xf32>
      %120 = vector.multi_reduction <add>, %119, %cst_42 [1] : vector<8x128xf32> to vector<8xf32>
      %121 = vector.shape_cast %120 : vector<8xf32> to vector<8x1xf32>
      %122 = arith.subf %arg8, %121 : vector<8x1xf32>
      %123 = arith.mulf %122, %9 : vector<8x1xf32>
      %124 = vector.broadcast %cst_25 : f32 to vector<8x1xf32>
      %125 = arith.mulf %124, %arg9 : vector<8x1xf32>
      %cst_43 = arith.constant 1.000000e+00 : f32
      %126 = arith.subf %cst_43, %cst_25 : f32
      %127 = vector.broadcast %126 : f32 to vector<8x1xf32>
      %128 = arith.mulf %127, %123 : vector<8x1xf32>
      %129 = arith.addf %125, %128 : vector<8x1xf32>
      %130 = vector.broadcast %cst_26 : f32 to vector<8x1xf32>
      %131 = arith.mulf %130, %arg10 : vector<8x1xf32>
      %cst_44 = arith.constant 1.000000e+00 : f32
      %132 = arith.subf %cst_44, %cst_26 : f32
      %133 = arith.mulf %123, %123 : vector<8x1xf32>
      %134 = vector.broadcast %132 : f32 to vector<8x1xf32>
      %135 = arith.mulf %134, %133 : vector<8x1xf32>
      %136 = arith.addf %131, %135 : vector<8x1xf32>
      %137 = arith.index_cast %arg7 : i32 to index
      %138 = memref.load %arg4[%137] : memref<100xf32, #tpu.memory_space<smem>>
      %139 = vector.broadcast %138 : f32 to vector<8x1xf32>
      %140 = arith.mulf %139, %129 : vector<8x1xf32>
      %141 = math.sqrt %136 : vector<8x1xf32>
      %142 = arith.index_cast %arg7 : i32 to index
      %143 = memref.load %arg5[%142] : memref<100xf32, #tpu.memory_space<smem>>
      %144 = vector.broadcast %143 : f32 to vector<8x1xf32>
      %145 = arith.addf %141, %144 : vector<8x1xf32>
      %146 = arith.divf %140, %145 : vector<8x1xf32>
      %147 = arith.subf %arg8, %146 : vector<8x1xf32>
      scf.yield %147, %129, %136 : vector<8x1xf32>, vector<8x1xf32>, vector<8x1xf32>
    }
    %c100_i32_27 = arith.constant 100 : i32
    %cst_28 = arith.constant 1.000000e+30 : f32
    %73 = vector.broadcast %cst_28 : f32 to vector<8x1xf32>
    %74 = arith.select %7, %72#0, %73 : vector<8x1xi1>, vector<8x1xf32>
    %cst_29 = arith.constant dense<0x7F800000> : vector<1xf32>
    %75 = vector.multi_reduction <minimumf>, %74, %cst_29 [0] : vector<8x1xf32> to vector<1xf32>
    %76 = vector.shape_cast %75 : vector<1xf32> to vector<1x1xf32>
    %cst_30 = arith.constant 0.000000e+00 : f32
    %cst_31 = arith.constant 1.000000e+30 : f32
    %77 = arith.subf %cst_30, %cst_31 : f32
    %78 = vector.broadcast %77 : f32 to vector<8x1xf32>
    %79 = arith.select %7, %72#0, %78 : vector<8x1xi1>, vector<8x1xf32>
    %cst_32 = arith.constant dense<0xFF800000> : vector<1xf32>
    %80 = vector.multi_reduction <maximumf>, %79, %cst_32 [0] : vector<8x1xf32> to vector<1xf32>
    %81 = vector.shape_cast %80 : vector<1xf32> to vector<1x1xf32>
    %82 = arith.subf %81, %76 : vector<1x1xf32>
    %cst_33 = arith.constant 9.99999996E-13 : f32
    %83 = vector.broadcast %cst_33 : f32 to vector<1x1xf32>
    %84 = arith.maximumf %82, %83 : vector<1x1xf32>
    %85 = vector.broadcast %76 : vector<1x1xf32> to vector<8x1xf32>
    %86 = arith.subf %72#0, %85 : vector<8x1xf32>
    %cst_34 = arith.constant 1.000000e+02 : f32
    %87 = vector.broadcast %cst_34 : f32 to vector<8x1xf32>
    %88 = arith.mulf %87, %86 : vector<8x1xf32>
    %89 = vector.broadcast %84 : vector<1x1xf32> to vector<8x1xf32>
    %90 = arith.divf %88, %89 : vector<8x1xf32>
    %91 = vector.shape_cast %90 : vector<8x1xf32> to vector<8x1xf32>
    %92 = vector.broadcast %91 : vector<8x1xf32> to vector<8x128xf32>
    %c0_35 = arith.constant 0 : index
    %c0_36 = arith.constant 0 : index
    %93 = vector.load %arg6[%c0_35, %c0_36] : memref<8x128xf32, #tpu.memory_space<vmem>>, vector<8x128xf32>
    tpu.vector_store %arg6[%c0_35, %c0_36], %92 {strides = array<i32>} : memref<8x128xf32, #tpu.memory_space<vmem>>, vector<8x128xf32>,
    return
  }
}

</mosaic_0001>

<llo_original>
// kernel: compare2score_forward.1
$region0: #{compare2score_forward.1}
  #allocation0 [shape = 'u32[]', space=smem, size = 0x4, offset = 0x4, fixed_abs, tag = 'smem constant byte address 0x4 - core index']
  #allocation1 [shape = 'u32[144,128]{1,0:T(1,128)}', space=vmem, size = 0x12000, scoped, tag = 'internal scratch']
  %s0 = inlined_call_operand.vmem [shape: f32[8,128], index: 0, kind: input, shape index: {}]
  %s1 = inlined_call_operand.vmem [shape: f32[8,128], index: 1, kind: input, shape index: {}]
  %s2 = inlined_call_operand.vmem [shape: f32[8,128], index: 2, kind: input, shape index: {}]
  %s3 = inlined_call_operand.vmem [shape: f32[8,1], index: 3, kind: input, shape index: {}]
  %s4 = inlined_call_operand.vmem [shape: f32[100], index: 4, kind: input, shape index: {}]
  %s5 = inlined_call_operand.vmem [shape: f32[100], index: 5, kind: input, shape index: {}]
  %s6 = inlined_call_operand.vmem [shape: f32[8,128], index: 6, kind: output, shape index: {}]
  %s7 = sld [smem:[#allocation0]]
  $region49: #{compare2score_forward.1} parent=0
    _
  %s9 = ssub.s32 1, %s7
  %s10 = scalar_select 0, %s9, %s7
  $region1: #{compare2score_forward.1} parent=0
    #allocation2 [shape = 'u8[512]{0}', space=smem, size = 0x200, scoped, tag = 'input window, operand 4, single buffered']
    #allocation3 [shape = 's32[1]{0}', space=sflag, size = 0x4, scoped, tag = 'scoped memory for compare2score_forward.1']
    #allocation4 [shape = 'u8[512]{0}', space=smem, size = 0x200, scoped, tag = 'input window, operand 5, single buffered']
    #allocation5 [shape = 's32[1]{0}', space=sflag, size = 0x4, scoped, tag = 'scoped memory for compare2score_forward.1']
    %11 = vsyncpa [#allocation3], 0
    %12 = vsyncpa [#allocation5], 0
    // Predicated region
    $region2: #{compare2score_forward.1} parent=1 // pred_check
      _
    $region3: #{compare2score_forward.1} parent=1 // pred_check_branch
      %14 = sbr.rel (0) target = $region5
    $region4: #{compare2score_forward.1} parent=1 // pred_region
      _
    $region5: #{compare2score_forward.1} parent=1 // pred_fallthru
      _
    // Predicated region
    $region6: #{compare2score_forward.1} parent=1 // pred_check
      _
    $region7: #{compare2score_forward.1} parent=1 // pred_check_branch
      %16 = sbr.rel (0) target = $region9
    $region8: #{compare2score_forward.1} parent=1 // pred_region
      _
    $region9: #{compare2score_forward.1} parent=1 // pred_fallthru
      _
    // Predicated region
    $region10: #{compare2score_forward.1} parent=1 // pred_check
      _
    $region11: #{compare2score_forward.1} parent=1 // pred_check_branch
      %18 = sbr.rel (0) target = $region13
    $region12: #{compare2score_forward.1} parent=1 // pred_region
      _
    $region13: #{compare2score_forward.1} parent=1 // pred_fallthru
      _
    // Predicated region
    $region14: #{compare2score_forward.1} parent=1 // pred_check
      _
    $region15: #{compare2score_forward.1} parent=1 // pred_check_branch
      %20 = sbr.rel (0) target = $region17
    $region16: #{compare2score_forward.1} parent=1 // pred_region
      _
    $region17: #{compare2score_forward.1} parent=1 // pred_fallthru
      _
    // Predicated region
    $region18: #{compare2score_forward.1} parent=1 // pred_check
      _
    $region19: #{compare2score_forward.1} parent=1 // pred_check_branch
      %22 = sbr.rel (0) target = $region21
    $region20: #{compare2score_forward.1} parent=1 // pred_region
      %s24 = ssub.s32 16, 16
      %25 = vsyncadd [#allocation3], %s24
      %s27 = sshll.u32 %s4, 4
      %s28 = int_to_ptr.vmem [resolvable:$true] %s27
      %30 = dma.vmem_to_smem %s28, 16, [#allocation2], [#allocation3]
    $region21: #{compare2score_forward.1} parent=1 // pred_fallthru
      _
    // Predicated region
    $region22: #{compare2score_forward.1} parent=1 // pred_check
      _
    $region23: #{compare2score_forward.1} parent=1 // pred_check_branch
      %32 = sbr.rel (0) target = $region25
    $region24: #{compare2score_forward.1} parent=1 // pred_region
      %s34 = ssub.s32 16, 16
      %35 = vsyncadd [#allocation5], %s34
      %s37 = sshll.u32 %s5, 4
      %s38 = int_to_ptr.vmem [resolvable:$true] %s37
      %40 = dma.vmem_to_smem %s38, 16, [#allocation4], [#allocation5]
    $region25: #{compare2score_forward.1} parent=1 // pred_fallthru
      _
    // Predicated region
    $region26: #{compare2score_forward.1} parent=1 // pred_check
      _
    $region27: #{compare2score_forward.1} parent=1 // pred_check_branch
      %42 = sbr.rel (0) target = $region29
    $region28: #{compare2score_forward.1} parent=1 // pred_region
      %43 = dma.done [#allocation3], 16
    $region29: #{compare2score_forward.1} parent=1 // pred_fallthru
      _
    // Predicated region
    $region30: #{compare2score_forward.1} parent=1 // pred_check
      _
    $region31: #{compare2score_forward.1} parent=1 // pred_check_branch
      %45 = sbr.rel (0) target = $region33
    $region32: #{compare2score_forward.1} parent=1 // pred_region
      %46 = dma.done [#allocation5], 16
    $region33: #{compare2score_forward.1} parent=1 // pred_fallthru
      _
    %47 = sfence
    %v48 = vlaneseq
    %v49 = vshrl.u32 %v48, 7
    %v50 = vlaneseq
    %v51 = vand.u32 %v50, 127
    %vm52 = vcmp.eq.s32.totalorder %v49, %v51
    %v53 = vsel %vm52, 1, 0
    %v54 = vcvt.s32.f32 %v53
    %vm55 = vcmp.lt.s32.totalorder %v49, 6
    %v56 = vsel %vm55, 1, 0
    %v57 = vcvt.s32.f32 %v56
    %v58 = vld [vmem:[%s0] sm:$0xff]
    %v59 = vmul.f32 %v58, 0.01
    %60 = vmax.xlane.f32.xlu0 %v59
    %v61 = vpop.xlane.xlu0 %60
    %v62 = vsub.f32 %v59, %v61
    %v63 = vmul.f32 %v62, 1.442695
    %v64 = vpow.pop %v63
    %65 = vadd.xlane.f32.xlu0 %v64
    %v66 = vpop.xlane.xlu0 %65
    %v67 = vrcp.pop %v66
    %v68 = vmul.f32 %v64, %v67
    %vm69 = vcmp.lt.s32.totalorder %v51, 5
    %v70 = vcvt.s32.f32 %v51
    %v71 = vmul.f32 %v70, 0.25
    %v72 = vsel %vm69, %v71, 0.0
    %v73 = vmul.f32 %v68, %v72
    %74 = vadd.xlane.f32.xlu0 %v73
    %v75 = vpop.xlane.xlu0 %74
    %v76 = vmul.f32 %v75, %v54
    %v77 = vrot.slane %v76, 4
    %v78 = vadd.f32 %v76, %v77
    %v79 = vrot.slane %v78, 2
    %v80 = vadd.f32 %v78, %v79
    %v81 = vrot.slane %v80, 1
    %v82 = vadd.f32 %v80, %v81
    %vm83 = vcmp.eq.s32.totalorder %v49, 5
    %vm84 = vmand %vm83, %vm69
    %vm85 = vcmp.eq.s32.totalorder %v51, 5
    %vm86 = vcmp.lt.s32.totalorder %v49, 5
    %vm87 = vmand %vm85, %vm86
    %v88 = vld [vmem:[%s1] sm:$0xff]
    %v89 = vsel %vm84, %v82, 0.0
    %v90 = vadd.f32 %v88, %v89
    %v91 = vsub.f32 1.0, %v75
    %v92 = vsel %vm87, %v91, 0.0
    %v93 = vadd.f32 %v90, %v92
    %v94 = vld [vmem:[%s2] sm:$0xff]
    %v95 = vsel %vm87, %v75, 0.0
    %v96 = vadd.f32 %v94, %v95
    %v97 = vsub.f32 1.0, %v82
    %v98 = vsel %vm84, %v97, 0.0
    %v99 = vadd.f32 %v96, %v98
    %v100 = vld [vmem:[%s3] sm:$0xff]
    loop: start=0, step=1, limit=100
    $region34: #{compare2score_forward.1} parent=1 // loop_pre_header
      _
    $region35: #{compare2score_forward.1} parent=1 // loop_header
      %s102 = sphi 0, %s106
      %p103 = scmp.ge.s32.totalorder %s102, 100
      %v107 = vphi %v100, %v162
      %v108 = vphi 0.0, %v142
      %v109 = vphi 0.0, %v146
    $region36: #{compare2score_forward.1} parent=1 // loop_header_branch
      %105 = sbr.rel (%p103) target = $region40
    $region37: #{compare2score_forward.1} parent=1 // loop_body
      %111 = vset.pattern.permute.xlu0 0
      %112 = vperm.xlu0 %111, %v107
      %v113 = vpop.permute.xlu0 %112
      %v115 = vmul.f32 %v113, %v54
      %v116 = vrot.slane %v115, 4
      %v117 = vadd.f32 %v115, %v116
      %v118 = vrot.slane %v117, 2
      %v119 = vadd.f32 %v117, %v118
      %v120 = vrot.slane %v119, 1
      %v121 = vadd.f32 %v119, %v120
      %v122 = vsub.f32 %v113, %v121
      %v123 = vsub.f32 0.0, %v122
      %v124 = vmul.f32 %v123, 1.442695
      %v125 = vpow.pop %v124
      %v126 = vadd.f32 %v125, 1.0
      %v127 = vrcp.pop %v126
      %v128 = vmul.f32 %v125, %v127
      %vm129 = vcmp.gt.f32.partialorder %v127, 1e-06
      %v130 = vmul.f32 %v93, %v128
      %v131 = vsel %vm129, %v130, 0.0
      %vm132 = vcmp.gt.f32.partialorder %v128, 1e-06
      %v133 = vmul.f32 %v99, %v127
      %v134 = vsel %vm132, %v133, 0.0
      %v135 = vsub.f32 %v131, %v134
      %136 = vadd.xlane.f32.xlu0 %v135
      %v137 = vpop.xlane.xlu0 %136
      %v138 = vsub.f32 %v107, %v137
      %v139 = vmul.f32 %v138, %v57
      %v140 = vmul.f32 %v108, 0.9
      %v141 = vmul.f32 %v139, 0.100000024
      %v142 = vadd.f32 %v140, %v141
      %v143 = vmul.f32 %v109, 0.999
      %v144 = vmul.f32 %v139, %v139
      %v145 = vmul.f32 %v144, 0.0009999871
      %v146 = vadd.f32 %v143, %v145
      %s147 = sld [smem:[#allocation2 + %s102]]
      %v148 = vstv %s147
      %v149 = vmul.f32 %v148, %v142
      %v150 = vrsqrt.pop %v146
      %v151 = vmul.f32 %v146, %v150
      %vm152 = vcmp.eq.f32.partialorder %v146, inf
      %v153 = vsel %vm152, %v146, %v151
      %vm154 = vcmp.eq.f32.partialorder %v146, 0.0
      %v155 = vand.u32 %v146, 2147483648
      %v156 = vsel %vm154, %v155, %v153
      %s157 = sld [smem:[#allocation4 + %s102]]
      %v158 = vstv %s157
      %v159 = vadd.f32 %v156, %v158
      %v160 = vrcp.pop %v159
      %v161 = vmul.f32 %v149, %v160
      %v162 = vsub.f32 %v107, %v161
    $region38: #{compare2score_forward.1} parent=1 // loop_footer
      %s106 = sadd.s32 1, %s102
    $region39: #{compare2score_forward.1} parent=1 // loop_footer_branch
      %101 = sbr.rel target = $region35
    $region40: #{compare2score_forward.1} parent=1 // loop_exit
      _
    %v163 = vsel %vm55, %v107, 1e+30
    %vm164 = vcmask 7168
    %v165 = vsel %vm164, %v163, inf
    %v166 = vrot.slane %v165, 4
    %v167 = vmin.f32 %v165, %v166
    %v168 = vrot.slane %v167, 2
    %v169 = vmin.f32 %v167, %v168
    %v170 = vrot.slane %v169, 1
    %v171 = vmin.f32 %v169, %v170
    %v172 = vsel %vm55, %v107, -1e+30
    %v173 = vsel %vm164, %v172, -inf
    %v174 = vrot.slane %v173, 4
    %v175 = vmax.f32 %v173, %v174
    %v176 = vrot.slane %v175, 2
    %v177 = vmax.f32 %v175, %v176
    %v178 = vrot.slane %v177, 1
    %v179 = vmax.f32 %v177, %v178
    %v180 = vsub.f32 %v179, %v171
    %v181 = vmax.f32 %v180, 1e-12
    %v182 = vsub.f32 %v107, %v171
    %v183 = vmul.f32 %v182, 100.0
    %v184 = vrcp.pop %v181
    %v185 = vmul.f32 %v183, %v184
    %187 = vset.pattern.permute.xlu0 0
    %188 = vperm.xlu0 %187, %v185
    %v189 = vpop.permute.xlu0 %188
    %191 = vst [vmem:[%s6] sm:$0xff] %v189
    // Predicated region
    $region41: #{compare2score_forward.1} parent=1 // pred_check
      _
    $region42: #{compare2score_forward.1} parent=1 // pred_check_branch
      %193 = sbr.rel (0) target = $region44
    $region43: #{compare2score_forward.1} parent=1 // pred_region
      _
    $region44: #{compare2score_forward.1} parent=1 // pred_fallthru
      _
    // Predicated region
    $region45: #{compare2score_forward.1} parent=1 // pred_check
      _
    $region46: #{compare2score_forward.1} parent=1 // pred_check_branch
      %195 = sbr.rel (0) target = $region48
    $region47: #{compare2score_forward.1} parent=1 // pred_region
      _
    $region48: #{compare2score_forward.1} parent=1 // pred_fallthru
      _
    %196 = vsyncpa [#allocation3], 1
    %197 = vsyncpa [#allocation5], 1

</llo_original>
